<compile_context>
chip_gen: v6e
topology: v6e:2x2x1
jax: 0.10.0
libtpu: 0.0.40
codegen_flags: <defaults>
</compile_context>

<pallas_src>
import jax
import jax.numpy as jnp
from jax.experimental import pallas as pl
from jax.experimental.pallas import tpu as pltpu


def _fused_mlp_kernel(x_ref, w1_ref, b1_ref, w2_ref, b2_ref, o_ref):
    # x: (tm, K=3)   w1: (K, H)   b1: (1, H)   w2: (H, C)   b2: (1, C)   o: (tm, C)
    x = x_ref[...]
    K = x_ref.shape[1]
    H = w1_ref.shape[1]

    # First layer: K = 3 contraction as unrolled VPU broadcast-FMAs
    # ((tm,1) lane-splat * (1,H) sublane-splat), fusing the concat semantics.
    h = jnp.zeros((x.shape[0], H), dtype=jnp.float32)
    for k in range(K):
        h = h + x[:, k:k + 1] * w1_ref[k:k + 1, :]
    h = jnp.maximum(h + b1_ref[...], 0.0)                     # bias + ReLU (VPU)

    # Second layer: K = H, MXU with f32 accumulation.
    out = jnp.dot(h, w2_ref[...], preferred_element_type=jnp.float32) + b2_ref[...]
    o_ref[...] = out.astype(o_ref.dtype)


def _cdiv(a, b):
    return -(-a // b)


def _round_up(x, m):
    return _cdiv(x, m) * m


def logit_fusion_forward(logits1, logits2, w1, b1, w2, b2, *, tm=4096):
    """logits1: (B, f1), logits2: (B, f2) with f1 + f2 == w1.shape[0] (= 3)."""
    B, f1 = logits1.shape
    B2, f2 = logits2.shape
    assert B == B2, "batch dims must match"
    K = f1 + f2
    assert K == w1.shape[0], "feature split must match W1's input dim"
    H = w1.shape[1]
    C = w2.shape[1]

    # Merge the two logit tensors in the wrapper (tiny XLA concat) so the kernel
    # sees a single lane-padded input stream.
    x = jnp.concatenate((logits1, logits2), axis=1).astype(jnp.float32)   # (B, K)
    w1 = w1.astype(jnp.float32)
    b1_2d = b1.reshape(1, H).astype(jnp.float32)
    w2 = w2.astype(jnp.float32)
    b2_2d = b2.reshape(1, C).astype(jnp.float32)

    # ---- Batch-tile selection -------------------------------------------------
    # Cap tm so double-buffered, lane-padded (tm,128) f32 in/out streams plus the
    # (tm,H) intermediate stay well inside v5e's 16 MiB default scoped VMEM.
    tm = max(8, min(int(tm), 4096))
    # Padding-minimizing tile: pick the step count first, then the tile size.
    n_steps = _cdiv(B, tm)
    if n_steps < 2 and B >= 16:
        n_steps = 2                       # v7x: keep both TensorCores busy
    tm_eff = _round_up(_cdiv(B, n_steps), 8)      # f32 sublane multiple
    grid_n = _cdiv(B, tm_eff)
    Bp = grid_n * tm_eff
    if Bp != B:
        x = jnp.pad(x, ((0, Bp - B), (0, 0)))

    # Scoped-VMEM budget: in + out streams lane-padded to 128 and double-buffered,
    # plus the (tm, H) intermediate and the small resident weights.
    per_stream = tm_eff * 128 * 4
    vmem_limit = int(max(6 * per_stream + (2 << 20), 8 << 20))

    const = lambda i: (0, 0)              # weights / biases: VMEM-resident

    out = pl.pallas_call(
        _fused_mlp_kernel,
        out_shape=jax.ShapeDtypeStruct((Bp, C), jnp.float32),
        grid=(grid_n,),
        in_specs=[
            pl.BlockSpec((tm_eff, K), lambda i: (i, 0)),
            pl.BlockSpec((K, H), const),
            pl.BlockSpec((1, H), const),
            pl.BlockSpec((H, C), const),
            pl.BlockSpec((1, C), const),
        ],
        out_specs=pl.BlockSpec((tm_eff, C), lambda i: (i, 0)),
        compiler_params=pltpu.CompilerParams(
            dimension_semantics=("parallel",),
            vmem_limit_bytes=vmem_limit,
        ),
    )(x, w1, b1_2d, w2, b2_2d)

    return out[:B] if Bp != B else out


def _reference(logits1, logits2, w1, b1, w2, b2):
    combined = jnp.concatenate((logits1, logits2), axis=1)
    h = jax.nn.relu(combined @ w1 + b1)
    return h @ w2 + b2


if __name__ == "__main__":
    hidden_dim = 64
    num_classes = 2
    batch = 8

    key = jax.random.PRNGKey(0)
    k1, k2, k3, k4, k5, k6 = jax.random.split(key, 6)

    # Two sets of per-classifier logits whose feature dims sum to 3.
    logits1 = jax.random.normal(k1, (batch, 2), dtype=jnp.float32)
    logits2 = jax.random.normal(k2, (batch, 1), dtype=jnp.float32)

    # Parameters (shapes from nn.Linear(3, H) / nn.Linear(H, C)), stored (in, out).
    w1 = jax.random.normal(k3, (3, hidden_dim), dtype=jnp.float32) * 0.1
    b1 = jax.random.normal(k4, (hidden_dim,), dtype=jnp.float32) * 0.1
    w2 = jax.random.normal(k5, (hidden_dim, num_classes), dtype=jnp.float32) * 0.1
    b2 = jax.random.normal(k6, (num_classes,), dtype=jnp.float32) * 0.1

    out = jax.block_until_ready(logit_fusion_forward(logits1, logits2, w1, b1, w2, b2))
    ref = _reference(logits1, logits2, w1, b1, w2, b2)
    assert out.shape == (batch, num_classes)
    assert jnp.allclose(out, ref, atol=1e-5, rtol=1e-5), "mismatch vs reference"

    # Multi-step / padded grid path (B not a multiple of the tile; >= 2 grid steps).
    bigB = 70
    kb1, kb2 = jax.random.split(jax.random.PRNGKey(1), 2)
    L1 = jax.random.normal(kb1, (bigB, 2), dtype=jnp.float32)
    L2 = jax.random.normal(kb2, (bigB, 1), dtype=jnp.float32)
    out_big = jax.block_until_ready(
        logit_fusion_forward(L1, L2, w1, b1, w2, b2, tm=32))
    ref_big = _reference(L1, L2, w1, b1, w2, b2)
    assert out_big.shape == (bigB, num_classes)
    assert jnp.allclose(out_big, ref_big, atol=1e-5, rtol=1e-5), "mismatch (batched path)"

    print("KERNEL_OK")
</pallas_src>

<mosaic_0001>
module attributes {stable_mosaic.version = 11 : i64} {
  func.func @_fused_mlp_kernel(%arg0: i32, %arg1: memref<8x3xf32, #tpu.memory_space<vmem>>, %arg2: memref<3x64xf32, #tpu.memory_space<vmem>>, %arg3: memref<1x64xf32, #tpu.memory_space<vmem>>, %arg4: memref<64x2xf32, #tpu.memory_space<vmem>>, %arg5: memref<1x2xf32, #tpu.memory_space<vmem>>, %arg6: memref<8x2xf32, #tpu.memory_space<vmem>>) attributes {dimension_semantics = [#tpu.dimension_semantics<parallel>], iteration_bounds = array<i64: 1>, scalar_prefetch = 0 : i64, scratch_operands = 0 : i64, tpu.core_type = #tpu.core_type<tc>, window_params = [{transform_indices = @transform_0, window_bounds = array<i64: 8, 3>}, {pipeline_mode = #tpu.pipeline_mode<synchronous>, transform_indices = @transform_1, window_bounds = array<i64: 3, 64>}, {pipeline_mode = #tpu.pipeline_mode<synchronous>, transform_indices = @transform_2, window_bounds = array<i64: 1, 64>}, {pipeline_mode = #tpu.pipeline_mode<synchronous>, transform_indices = @transform_3, window_bounds = array<i64: 64, 2>}, {pipeline_mode = #tpu.pipeline_mode<synchronous>, transform_indices = @transform_4, window_bounds = array<i64: 1, 2>}, {transform_indices = @transform_5, window_bounds = array<i64: 8, 2>}]} {
    %c0 = arith.constant 0 : index
    %c0_0 = arith.constant 0 : index
    %0 = vector.load %arg1[%c0, %c0_0] : memref<8x3xf32, #tpu.memory_space<vmem>>, vector<8x3xf32>
    %cst = arith.constant 0.000000e+00 : f32
    %1 = vector.broadcast %cst : f32 to vector<8x64xf32>
    %2 = vector.extract_strided_slice %0 {offsets = [0, 0], sizes = [8, 1], strides = [1, 1]} : vector<8x3xf32> to vector<8x1xf32>
    %c0_1 = arith.constant 0 : index
    %c0_2 = arith.constant 0 : index
    %3 = vector.load %arg2[%c0_1, %c0_2] : memref<3x64xf32, #tpu.memory_space<vmem>>, vector<1x64xf32>
    %4 = vector.broadcast %2 : vector<8x1xf32> to vector<8x64xf32>
    %5 = vector.broadcast %3 : vector<1x64xf32> to vector<8x64xf32>
    %6 = arith.mulf %4, %5 : vector<8x64xf32>
    %7 = arith.addf %1, %6 : vector<8x64xf32>
    %8 = vector.extract_strided_slice %0 {offsets = [0, 1], sizes = [8, 1], strides = [1, 1]} : vector<8x3xf32> to vector<8x1xf32>
    %c1 = arith.constant 1 : index
    %c0_3 = arith.constant 0 : index
    %9 = vector.load %arg2[%c1, %c0_3] : memref<3x64xf32, #tpu.memory_space<vmem>>, vector<1x64xf32>
    %10 = vector.broadcast %8 : vector<8x1xf32> to vector<8x64xf32>
    %11 = vector.broadcast %9 : vector<1x64xf32> to vector<8x64xf32>
    %12 = arith.mulf %10, %11 : vector<8x64xf32>
    %13 = arith.addf %7, %12 : vector<8x64xf32>
    %14 = vector.extract_strided_slice %0 {offsets = [0, 2], sizes = [8, 1], strides = [1, 1]} : vector<8x3xf32> to vector<8x1xf32>
    %c2 = arith.constant 2 : index
    %c0_4 = arith.constant 0 : index
    %15 = vector.load %arg2[%c2, %c0_4] : memref<3x64xf32, #tpu.memory_space<vmem>>, vector<1x64xf32>
    %16 = vector.broadcast %14 : vector<8x1xf32> to vector<8x64xf32>
    %17 = vector.broadcast %15 : vector<1x64xf32> to vector<8x64xf32>
    %18 = arith.mulf %16, %17 : vector<8x64xf32>
    %19 = arith.addf %13, %18 : vector<8x64xf32>
    %c0_5 = arith.constant 0 : index
    %c0_6 = arith.constant 0 : index
    %20 = vector.load %arg3[%c0_5, %c0_6] : memref<1x64xf32, #tpu.memory_space<vmem>>, vector<1x64xf32>
    %21 = vector.broadcast %20 : vector<1x64xf32> to vector<8x64xf32>
    %22 = arith.addf %19, %21 : vector<8x64xf32>
    %cst_7 = arith.constant 0.000000e+00 : f32
    %23 = vector.broadcast %cst_7 : f32 to vector<8x64xf32>
    %24 = arith.maximumf %22, %23 : vector<8x64xf32>
    %c0_8 = arith.constant 0 : index
    %c0_9 = arith.constant 0 : index
    %25 = vector.load %arg4[%c0_8, %c0_9] : memref<64x2xf32, #tpu.memory_space<vmem>>, vector<64x2xf32>
    %cst_10 = arith.constant dense<0.000000e+00> : vector<8x2xf32>
    %26 = tpu.matmul %24, %25, %cst_10 {dimension_numbers = #tpu.dot_dimension_numbers<[1], [0], [0], [1], [0, 0, 1, 1], [], []>} : vector<8x64xf32>, vector<64x2xf32>, vector<8x2xf32> -> vector<8x2xf32>
    %c0_11 = arith.constant 0 : index
    %c0_12 = arith.constant 0 : index
    %27 = vector.load %arg5[%c0_11, %c0_12] : memref<1x2xf32, #tpu.memory_space<vmem>>, vector<1x2xf32>
    %28 = vector.broadcast %27 : vector<1x2xf32> to vector<8x2xf32>
    %29 = arith.addf %26, %28 : vector<8x2xf32>
    %c0_13 = arith.constant 0 : index
    %c0_14 = arith.constant 0 : index
    %30 = vector.load %arg6[%c0_13, %c0_14] : memref<8x2xf32, #tpu.memory_space<vmem>>, vector<8x2xf32>
    tpu.vector_store %arg6[%c0_13, %c0_14], %29 {strides = array<i32>} : memref<8x2xf32, #tpu.memory_space<vmem>>, vector<8x2xf32>,
    return
  }
  func.func @transform_0(%arg0: i32) -> (i32, i32) {
    %c0_i32 = arith.constant 0 : i32
    %c0_i32_0 = arith.constant 0 : i32
    return %arg0, %c0_i32 : i32, i32
  }
  func.func @transform_1(%arg0: i32) -> (i32, i32) {
    %c0_i32 = arith.constant 0 : i32
    %c0_i32_0 = arith.constant 0 : i32
    %c0_i32_1 = arith.constant 0 : i32
    return %c0_i32, %c0_i32_0 : i32, i32
  }
  func.func @transform_2(%arg0: i32) -> (i32, i32) {
    %c0_i32 = arith.constant 0 : i32
    %c0_i32_0 = arith.constant 0 : i32
    %c0_i32_1 = arith.constant 0 : i32
    return %c0_i32, %c0_i32_0 : i32, i32
  }
  func.func @transform_3(%arg0: i32) -> (i32, i32) {
    %c0_i32 = arith.constant 0 : i32
    %c0_i32_0 = arith.constant 0 : i32
    %c0_i32_1 = arith.constant 0 : i32
    return %c0_i32, %c0_i32_0 : i32, i32
  }
  func.func @transform_4(%arg0: i32) -> (i32, i32) {
    %c0_i32 = arith.constant 0 : i32
    %c0_i32_0 = arith.constant 0 : i32
    %c0_i32_1 = arith.constant 0 : i32
    return %c0_i32, %c0_i32_0 : i32, i32
  }
  func.func @transform_5(%arg0: i32) -> (i32, i32) {
    %c0_i32 = arith.constant 0 : i32
    %c0_i32_0 = arith.constant 0 : i32
    return %arg0, %c0_i32 : i32, i32
  }
}

</mosaic_0001>

<llo_original>
// kernel: tpu_custom_call.1
$region0: #{tpu_custom_call.1}
  #allocation0 [shape = 'u32[]', space=smem, size = 0x4, offset = 0x4, fixed_abs, tag = 'smem constant byte address 0x4 - core index']
  #allocation1 [shape = 'u32[144,128]{1,0:T(1,128)}', space=vmem, size = 0x12000, scoped, tag = 'internal scratch']
  %s0 = inlined_call_operand.vmem [shape: f32[8,3], index: 0, kind: input, shape index: {}]
  %s1 = inlined_call_operand.vmem [shape: f32[3,64], index: 1, kind: input, shape index: {}]
  %s2 = inlined_call_operand.vmem [shape: f32[1,64], index: 2, kind: input, shape index: {}]
  %s3 = inlined_call_operand.vmem [shape: f32[64,2], index: 3, kind: input, shape index: {}]
  %s4 = inlined_call_operand.vmem [shape: f32[1,2], index: 4, kind: input, shape index: {}]
  %s5 = inlined_call_operand.vmem [shape: f32[8,2], index: 5, kind: output, shape index: {}]
  %s6 = sld [smem:[#allocation0]]
  $region30: #{tpu_custom_call.1} parent=0
    _
  %s8 = ssub.s32 1, %s6
  %s9 = scalar_select 0, %s8, %s6
  // Predicated region
  $region2: #{tpu_custom_call.1} parent=0 // pred_check
    _
  $region3: #{tpu_custom_call.1} parent=0 // pred_check_branch
    %11 = sbr.rel (0) target = $region5
  $region4: #{tpu_custom_call.1} parent=0 // pred_region
    _
  $region5: #{tpu_custom_call.1} parent=0 // pred_fallthru
    _
  // Predicated region
  $region6: #{tpu_custom_call.1} parent=0 // pred_check
    _
  $region7: #{tpu_custom_call.1} parent=0 // pred_check_branch
    %13 = sbr.rel (0) target = $region9
  $region8: #{tpu_custom_call.1} parent=0 // pred_region
    _
  $region9: #{tpu_custom_call.1} parent=0 // pred_fallthru
    _
  // Predicated region
  $region10: #{tpu_custom_call.1} parent=0 // pred_check
    _
  $region11: #{tpu_custom_call.1} parent=0 // pred_check_branch
    %15 = sbr.rel (0) target = $region13
  $region12: #{tpu_custom_call.1} parent=0 // pred_region
    _
  $region13: #{tpu_custom_call.1} parent=0 // pred_fallthru
    _
  // Predicated region
  $region14: #{tpu_custom_call.1} parent=0 // pred_check
    _
  $region15: #{tpu_custom_call.1} parent=0 // pred_check_branch
    %17 = sbr.rel (0) target = $region17
  $region16: #{tpu_custom_call.1} parent=0 // pred_region
    _
  $region17: #{tpu_custom_call.1} parent=0 // pred_fallthru
    _
  // Predicated region
  $region18: #{tpu_custom_call.1} parent=0 // pred_check
    _
  $region19: #{tpu_custom_call.1} parent=0 // pred_check_branch
    %19 = sbr.rel (0) target = $region21
  $region20: #{tpu_custom_call.1} parent=0 // pred_region
    _
  $region21: #{tpu_custom_call.1} parent=0 // pred_fallthru
    _
  %v20 = vld [vmem:[%s0] sm:$0xff]
  %v21 = vld [vmem:[%s1] sm:$0x1]
  %23 = vset.pattern.permute.xlu0 0
  %24 = vperm.xlu0 %23, %v20
  %v25 = vpop.permute.xlu0 %24
  %v27 = vlaneseq
  %v28 = vshrl.u32 %v27, 7
  %v29 = vsub.s32 0, %v28
  %v30 = vrot.slane %v21, %v29
  %v31 = vmul.f32 %v25, %v30
  %v32 = vadd.f32 %v31, 0.0
  %v33 = vld [vmem:[%s1 + $0x1] sm:$0x1]
  %34 = vset.pattern.permute.xlu0 1
  %35 = vperm.xlu0 %34, %v20
  %v36 = vpop.permute.xlu0 %35
  %v38 = vlaneseq
  %v39 = vshrl.u32 %v38, 7
  %v40 = vsub.s32 0, %v39
  %v41 = vrot.slane %v33, %v40
  %v42 = vmul.f32 %v36, %v41
  %v43 = vadd.f32 %v32, %v42
  %v44 = vld [vmem:[%s1 + $0x2] sm:$0x1]
  %45 = vset.pattern.permute.xlu0 2
  %46 = vperm.xlu0 %45, %v20
  %v47 = vpop.permute.xlu0 %46
  %v49 = vlaneseq
  %v50 = vshrl.u32 %v49, 7
  %v51 = vsub.s32 0, %v50
  %v52 = vrot.slane %v44, %v51
  %v53 = vmul.f32 %v47, %v52
  %v54 = vadd.f32 %v43, %v53
  %v55 = vld [vmem:[%s2] sm:$0x1]
  %v57 = vlaneseq
  %v58 = vshrl.u32 %v57, 7
  %v59 = vsub.s32 0, %v58
  %v60 = vrot.slane %v55, %v59
  %v62 = vadd.f32 %v54, %v60
  %v63 = vmax.f32 %v62, 0.0
  %v64 = vld [vmem:[%s3] sm:$0xff]
  %v65 = vld [vmem:[%s3 + $0x8] sm:$0xff]
  %v66 = vld [vmem:[%s3 + $0x10] sm:$0xff]
  %v67 = vld [vmem:[%s3 + $0x18] sm:$0xff]
  %v68 = vld [vmem:[%s3 + $0x20] sm:$0xff]
  %v69 = vld [vmem:[%s3 + $0x28] sm:$0xff]
  %v70 = vld [vmem:[%s3 + $0x30] sm:$0xff]
  %v71 = vld [vmem:[%s3 + $0x38] sm:$0xff]
  %v72 = vld [vmem:[%s4] sm:$0x1]
  %v74 = vlaneseq
  %v75 = vshrl.u32 %v74, 7
  %v76 = vsub.s32 0, %v75
  %v77 = vrot.slane %v72, %v76
  %vm79 = vcmask 523264
  %v81 = vsel %vm79, %v63, 0
  %83 = vmatprep.subr.mxu0 0.0
  %84 = vmatpush1.msra.mxu0 0.0
  %85 = vmatprep.subr.mxu0 0.0
  %86 = vmatpush1.msra.mxu0 0.0
  %87 = vmatprep.subr.mxu0 0.0
  %88 = vmatpush1.msra.mxu0 0.0
  %89 = vmatprep.subr.mxu0 0.0
  %90 = vmatpush1.msra.mxu0 0.0
  %91 = vmatprep.subr.mxu0 0.0
  %92 = vmatpush1.msra.mxu0 0.0
  %93 = vmatprep.subr.mxu0 0.0
  %94 = vmatpush1.msra.mxu0 0.0
  %95 = vmatprep.subr.mxu0 0.0
  %96 = vmatpush1.msra.mxu0 0.0
  %97 = vmatprep.subr.mxu0 0.0
  %98 = vmatpush1.msra.mxu0 0.0
  %99 = vmatprep.subr.mxu0 0.0
  %100 = vmatpush1.msra.mxu0 %v71
  %101 = vmatprep.subr.mxu0 0.0
  %102 = vmatpush1.msra.mxu0 %v70
  %103 = vmatprep.subr.mxu0 0.0
  %104 = vmatpush1.msra.mxu0 %v69
  %105 = vmatprep.subr.mxu0 0.0
  %106 = vmatpush1.msra.mxu0 %v68
  %107 = vmatprep.subr.mxu0 0.0
  %108 = vmatpush1.msra.mxu0 %v67
  %109 = vmatprep.subr.mxu0 0.0
  %110 = vmatpush1.msra.mxu0 %v66
  %111 = vmatprep.subr.mxu0 0.0
  %112 = vmatpush1.msra.mxu0 %v65
  %113 = vmatprep.subr.mxu0 0.0
  %114 = vmatpush1.msra.mxu0 %v64
  %115 = vmatprep.subr.mxu0 0.0
  %116 = vmatpush2.msra.mxu0 0.0
  %117 = vmatprep.subr.mxu0 0.0
  %118 = vmatpush2.msra.mxu0 0.0
  %119 = vmatprep.subr.mxu0 0.0
  %120 = vmatpush2.msra.mxu0 0.0
  %121 = vmatprep.subr.mxu0 0.0
  %122 = vmatpush2.msra.mxu0 0.0
  %123 = vmatprep.subr.mxu0 0.0
  %124 = vmatpush2.msra.mxu0 0.0
  %125 = vmatprep.subr.mxu0 0.0
  %126 = vmatpush2.msra.mxu0 0.0
  %127 = vmatprep.subr.mxu0 0.0
  %128 = vmatpush2.msra.mxu0 0.0
  %129 = vmatprep.subr.mxu0 0.0
  %130 = vmatpush2.msra.mxu0 0.0
  %131 = vmatprep.subr.mxu0 0.0
  %132 = vmatpush2.msra.mxu0 0.0
  %133 = vmatprep.subr.mxu0 0.0
  %134 = vmatpush2.msra.mxu0 0.0
  %135 = vmatprep.subr.mxu0 0.0
  %136 = vmatpush2.msra.mxu0 0.0
  %137 = vmatprep.subr.mxu0 0.0
  %138 = vmatpush2.msra.mxu0 0.0
  %139 = vmatprep.subr.mxu0 0.0
  %140 = vmatpush2.msra.mxu0 0.0
  %141 = vmatprep.subr.mxu0 0.0
  %142 = vmatpush2.msra.mxu0 0.0
  %143 = vmatprep.subr.mxu0 0.0
  %144 = vmatpush2.msra.mxu0 0.0
  %145 = vmatprep.subr.mxu0 0.0
  %146 = vmatpush2.msra.mxu0 0.0
  %147 = vmatprep.mubr.f32.mxu0 0.0
  %148 = vmatmul.mubr.f32.gmra.mxu0 %v81
  %v149 = vpop.f32.mrf.mxu0
  %v150 = vadd.f32 %v77, %v149
  %v151 = vpop.f32.mrf.mxu0
  %152 = vdwg.mxu0
  %vm153 = vcmask 15360
  %154 = vst.msk [vmem:[%s5] sm:$0xff] %vm153, %v150
  // Predicated region
  $region22: #{tpu_custom_call.1} parent=0 // pred_check
    _
  $region23: #{tpu_custom_call.1} parent=0 // pred_check_branch
    %156 = sbr.rel (0) target = $region25
  $region24: #{tpu_custom_call.1} parent=0 // pred_region
    _
  $region25: #{tpu_custom_call.1} parent=0 // pred_fallthru
    _
  // Predicated region
  $region26: #{tpu_custom_call.1} parent=0 // pred_check
    _
  $region27: #{tpu_custom_call.1} parent=0 // pred_check_branch
    %158 = sbr.rel (0) target = $region29
  $region28: #{tpu_custom_call.1} parent=0 // pred_region
    _
  $region29: #{tpu_custom_call.1} parent=0 // pred_fallthru
    _

</llo_original>
